<compile_context>
chip_gen: v6e
topology: v6e:2x2x1
jax: 0.10.0
libtpu: 0.0.40
codegen_flags: <defaults>
</compile_context>

<pallas_src>
import jax
import jax.numpy as jnp
from jax.experimental import pallas as pl
from jax.experimental.pallas import tpu as pltpu


def _l1loss_kernel(scales_ref, tt_ref, tr_ref, te_ref, re_ref, out_ref):
    """scales_ref: (2,)   SMEM  [rescale_trans/B, rescale_rot/B]
       tt_ref:     (B,Dt) VMEM  target_transl
       tr_ref:     (B,Dr) VMEM  target_rot
       te_ref:     (B,Dt) VMEM  transl_err
       re_ref:     (B,Dr) VMEM  rot_err
       out_ref:    (1,1)  SMEM  scalar total loss
    """
    f32 = jnp.float32

    def smooth_l1_sum(pred_ref, tgt_ref):
        diff = pred_ref[...].astype(f32) - tgt_ref[...].astype(f32)
        ad = jnp.abs(diff)
        # SmoothL1 with beta = 1.0 (PyTorch default).
        elem = jnp.where(ad < 1.0, 0.5 * diff * diff, ad - 0.5)
        return jnp.sum(elem)

    loss_t = smooth_l1_sum(te_ref, tt_ref)
    loss_r = smooth_l1_sum(re_ref, tr_ref)
    out_ref[0, 0] = scales_ref[0] * loss_t + scales_ref[1] * loss_r


def l1_loss_pallas(target_transl, target_rot, transl_err, rot_err,
                   rescale_trans=1.0, rescale_rot=1.0):
    """Pallas TPU implementation of L1Loss.forward. Returns a float32 scalar."""
    f32 = jnp.float32
    B = transl_err.shape[0]

    # Two per-group scales (rescale / B).  Works for Python floats or traced
    # JAX scalars; no kernel recompile for different rescale values.
    inv_b = 1.0 / B
    scales = jnp.stack([
        jnp.asarray(rescale_trans, dtype=f32) * inv_b,
        jnp.asarray(rescale_rot, dtype=f32) * inv_b,
    ])

    vmem = pl.BlockSpec(memory_space=pltpu.MemorySpace.VMEM)
    smem = pl.BlockSpec(memory_space=pltpu.MemorySpace.SMEM)

    out = pl.pallas_call(
        _l1loss_kernel,
        out_shape=jax.ShapeDtypeStruct((1, 1), jnp.float32),
        in_specs=[smem, vmem, vmem, vmem, vmem],
        out_specs=smem,
    )(scales, target_transl, target_rot, transl_err, rot_err)
    return out[0, 0]


def _l1_loss_ref(target_transl, target_rot, transl_err, rot_err,
                 rescale_trans, rescale_rot):
    """Pure-JAX reference mirroring the PyTorch module exactly."""
    def smooth_l1_sum_mean(pred, target):
        diff = pred - target
        ad = jnp.abs(diff)
        elem = jnp.where(ad < 1.0, 0.5 * diff * diff, ad - 0.5)
        return jnp.mean(jnp.sum(elem, axis=1))
    lt = smooth_l1_sum_mean(transl_err, target_transl)
    lr = smooth_l1_sum_mean(rot_err, target_rot)
    return rescale_trans * lt + rescale_rot * lr


if __name__ == "__main__":
    key = jax.random.PRNGKey(0)
    k0, k1, k2, k3 = jax.random.split(key, 4)

    batch = 8
    # translation (B, 3), rotation quaternion (B, 4) — matches typical usage.
    target_transl = jax.random.normal(k0, (batch, 3), dtype=jnp.float32)
    target_rot = jax.random.normal(k1, (batch, 4), dtype=jnp.float32)
    transl_err = jax.random.normal(k2, (batch, 3), dtype=jnp.float32) * 2.0
    rot_err = jax.random.normal(k3, (batch, 4), dtype=jnp.float32) * 2.0

    rescale_trans = 1.0
    rescale_rot = 2.0

    out = l1_loss_pallas(target_transl, target_rot, transl_err, rot_err,
                         rescale_trans, rescale_rot)
    out = jax.block_until_ready(out)

    ref = _l1_loss_ref(target_transl, target_rot, transl_err, rot_err,
                       rescale_trans, rescale_rot)
    assert jnp.allclose(out, ref, rtol=1e-5, atol=1e-5), (out, ref)

    print("KERNEL_OK")
</pallas_src>

<mosaic_0001>
module attributes {stable_mosaic.version = 11 : i64} {
  func.func @_l1loss_kernel(%arg0: memref<2xf32, #tpu.memory_space<smem>>, %arg1: memref<8x3xf32, #tpu.memory_space<vmem>>, %arg2: memref<8x4xf32, #tpu.memory_space<vmem>>, %arg3: memref<8x3xf32, #tpu.memory_space<vmem>>, %arg4: memref<8x4xf32, #tpu.memory_space<vmem>>, %arg5: memref<1x1xf32, #tpu.memory_space<smem>>) attributes {dimension_semantics = [], scalar_prefetch = 0 : i64, scratch_operands = 0 : i64, tpu.core_type = #tpu.core_type<tc>} {
    %c0 = arith.constant 0 : index
    %c0_0 = arith.constant 0 : index
    %0 = vector.load %arg3[%c0, %c0_0] : memref<8x3xf32, #tpu.memory_space<vmem>>, vector<8x3xf32>
    %c0_1 = arith.constant 0 : index
    %c0_2 = arith.constant 0 : index
    %1 = vector.load %arg1[%c0_1, %c0_2] : memref<8x3xf32, #tpu.memory_space<vmem>>, vector<8x3xf32>
    %2 = arith.subf %0, %1 : vector<8x3xf32>
    %3 = math.absf %2 : vector<8x3xf32>
    %cst = arith.constant 1.000000e+00 : f32
    %4 = vector.broadcast %cst : f32 to vector<8x3xf32>
    %5 = arith.cmpf olt, %3, %4 : vector<8x3xf32>
    %cst_3 = arith.constant 5.000000e-01 : f32
    %6 = vector.broadcast %cst_3 : f32 to vector<8x3xf32>
    %7 = arith.mulf %6, %2 : vector<8x3xf32>
    %8 = arith.mulf %7, %2 : vector<8x3xf32>
    %cst_4 = arith.constant 5.000000e-01 : f32
    %9 = vector.broadcast %cst_4 : f32 to vector<8x3xf32>
    %10 = arith.subf %3, %9 : vector<8x3xf32>
    %11 = arith.select %5, %8, %10 : vector<8x3xi1>, vector<8x3xf32>
    %12 = vector.shape_cast %11 : vector<8x3xf32> to vector<1x8x3xf32>
    %cst_5 = arith.constant dense<0.000000e+00> : vector<1xf32>
    %13 = vector.multi_reduction <add>, %12, %cst_5 [1, 2] : vector<1x8x3xf32> to vector<1xf32>
    %14 = vector.shape_cast %13 : vector<1xf32> to vector<1x1x1xf32>
    %15 = vector.extract %14[0, 0, 0] : f32 from vector<1x1x1xf32>
    %c0_6 = arith.constant 0 : index
    %c0_7 = arith.constant 0 : index
    %16 = vector.load %arg4[%c0_6, %c0_7] : memref<8x4xf32, #tpu.memory_space<vmem>>, vector<8x4xf32>
    %c0_8 = arith.constant 0 : index
    %c0_9 = arith.constant 0 : index
    %17 = vector.load %arg2[%c0_8, %c0_9] : memref<8x4xf32, #tpu.memory_space<vmem>>, vector<8x4xf32>
    %18 = arith.subf %16, %17 : vector<8x4xf32>
    %19 = math.absf %18 : vector<8x4xf32>
    %cst_10 = arith.constant 1.000000e+00 : f32
    %20 = vector.broadcast %cst_10 : f32 to vector<8x4xf32>
    %21 = arith.cmpf olt, %19, %20 : vector<8x4xf32>
    %cst_11 = arith.constant 5.000000e-01 : f32
    %22 = vector.broadcast %cst_11 : f32 to vector<8x4xf32>
    %23 = arith.mulf %22, %18 : vector<8x4xf32>
    %24 = arith.mulf %23, %18 : vector<8x4xf32>
    %cst_12 = arith.constant 5.000000e-01 : f32
    %25 = vector.broadcast %cst_12 : f32 to vector<8x4xf32>
    %26 = arith.subf %19, %25 : vector<8x4xf32>
    %27 = arith.select %21, %24, %26 : vector<8x4xi1>, vector<8x4xf32>
    %28 = vector.shape_cast %27 : vector<8x4xf32> to vector<1x8x4xf32>
    %cst_13 = arith.constant dense<0.000000e+00> : vector<1xf32>
    %29 = vector.multi_reduction <add>, %28, %cst_13 [1, 2] : vector<1x8x4xf32> to vector<1xf32>
    %30 = vector.shape_cast %29 : vector<1xf32> to vector<1x1x1xf32>
    %31 = vector.extract %30[0, 0, 0] : f32 from vector<1x1x1xf32>
    %c0_14 = arith.constant 0 : index
    %32 = memref.load %arg0[%c0_14] : memref<2xf32, #tpu.memory_space<smem>>
    %33 = arith.mulf %32, %15 : f32
    %c1 = arith.constant 1 : index
    %34 = memref.load %arg0[%c1] : memref<2xf32, #tpu.memory_space<smem>>
    %35 = arith.mulf %34, %31 : f32
    %36 = arith.addf %33, %35 : f32
    %c0_15 = arith.constant 0 : index
    %c0_16 = arith.constant 0 : index
    %37 = memref.load %arg5[%c0_15, %c0_16] : memref<1x1xf32, #tpu.memory_space<smem>>
    memref.store %36, %arg5[%c0_15, %c0_16] : memref<1x1xf32, #tpu.memory_space<smem>>
    return
  }
}

</mosaic_0001>

<llo_original>
// kernel: tpu_custom_call.1
$region0: #{tpu_custom_call.1}
  #allocation0 [shape = 'u32[]', space=smem, size = 0x4, offset = 0x4, fixed_abs, tag = 'smem constant byte address 0x4 - core index']
  #allocation1 [shape = 'u32[144,128]{1,0:T(1,128)}', space=vmem, size = 0x12000, scoped, tag = 'internal scratch']
  %s0 = inlined_call_operand.vmem [shape: f32[2], index: 0, kind: input, shape index: {}]
  %s1 = inlined_call_operand.vmem [shape: f32[8,3], index: 1, kind: input, shape index: {}]
  %s2 = inlined_call_operand.vmem [shape: f32[8,4], index: 2, kind: input, shape index: {}]
  %s3 = inlined_call_operand.vmem [shape: f32[8,3], index: 3, kind: input, shape index: {}]
  %s4 = inlined_call_operand.vmem [shape: f32[8,4], index: 4, kind: input, shape index: {}]
  %s5 = inlined_call_operand.hbm [shape: f32[1,1], index: 5, kind: output, shape index: {}]
  %s6 = sld [smem:[#allocation0]]
  $region34: #{tpu_custom_call.1} parent=0
    _
  %s8 = ssub.s32 1, %s6
  %s9 = scalar_select 0, %s8, %s6
  $region1: #{tpu_custom_call.1} parent=0
    #allocation2 [shape = 'u8[512]{0}', space=smem, size = 0x200, scoped, tag = 'input window, operand 0, single buffered']
    #allocation3 [shape = 's32[1]{0}', space=sflag, size = 0x4, scoped, tag = 'scoped memory for tpu_custom_call.1']
    #allocation4 [shape = 's32[1]{0}', space=sflag, size = 0x4, scoped, tag = 'scoped memory for tpu_custom_call.1']
    #allocation5 [shape = 'u8[512]{0}', space=smem, size = 0x200, scoped, tag = 'output window, operand 0, single buffered']
    %10 = vsyncpa [#allocation4], 0
    %11 = vsyncpa [#allocation3], 0
    // Predicated region
    $region2: #{tpu_custom_call.1} parent=1 // pred_check
      _
    $region3: #{tpu_custom_call.1} parent=1 // pred_check_branch
      %13 = sbr.rel (0) target = $region5
    $region4: #{tpu_custom_call.1} parent=1 // pred_region
      %s15 = ssub.s32 16, 16
      %16 = vsyncadd [#allocation4], %s15
      %s18 = sshll.u32 %s0, 4
      %s19 = int_to_ptr.vmem [resolvable:$true] %s18
      %21 = dma.vmem_to_smem %s19, 16, [#allocation2], [#allocation4]
    $region5: #{tpu_custom_call.1} parent=1 // pred_fallthru
      _
    // Predicated region
    $region6: #{tpu_custom_call.1} parent=1 // pred_check
      _
    $region7: #{tpu_custom_call.1} parent=1 // pred_check_branch
      %23 = sbr.rel (0) target = $region9
    $region8: #{tpu_custom_call.1} parent=1 // pred_region
      _
    $region9: #{tpu_custom_call.1} parent=1 // pred_fallthru
      _
    // Predicated region
    $region10: #{tpu_custom_call.1} parent=1 // pred_check
      _
    $region11: #{tpu_custom_call.1} parent=1 // pred_check_branch
      %25 = sbr.rel (0) target = $region13
    $region12: #{tpu_custom_call.1} parent=1 // pred_region
      _
    $region13: #{tpu_custom_call.1} parent=1 // pred_fallthru
      _
    // Predicated region
    $region14: #{tpu_custom_call.1} parent=1 // pred_check
      _
    $region15: #{tpu_custom_call.1} parent=1 // pred_check_branch
      %27 = sbr.rel (0) target = $region17
    $region16: #{tpu_custom_call.1} parent=1 // pred_region
      _
    $region17: #{tpu_custom_call.1} parent=1 // pred_fallthru
      _
    // Predicated region
    $region18: #{tpu_custom_call.1} parent=1 // pred_check
      _
    $region19: #{tpu_custom_call.1} parent=1 // pred_check_branch
      %29 = sbr.rel (0) target = $region21
    $region20: #{tpu_custom_call.1} parent=1 // pred_region
      _
    $region21: #{tpu_custom_call.1} parent=1 // pred_fallthru
      _
    // Predicated region
    $region22: #{tpu_custom_call.1} parent=1 // pred_check
      _
    $region23: #{tpu_custom_call.1} parent=1 // pred_check_branch
      %31 = sbr.rel (0) target = $region25
    $region24: #{tpu_custom_call.1} parent=1 // pred_region
      %32 = dma.done [#allocation4], 16
    $region25: #{tpu_custom_call.1} parent=1 // pred_fallthru
      _
    %33 = sfence
    %v34 = vld [vmem:[%s3] sm:$0xff]
    %v35 = vld [vmem:[%s1] sm:$0xff]
    %v36 = vsub.f32 %v34, %v35
    %v37 = vand.u32 2147483647, %v36
    %vm38 = vcmp.lt.f32.partialorder %v37, 1.0
    %v39 = vmul.f32 %v36, 0.5
    %v40 = vmul.f32 %v39, %v36
    %v41 = vsub.f32 %v37, 0.5
    %v42 = vsel %vm38, %v40, %v41
    %vm43 = vcmask 23552
    %v44 = vsel %vm43, %v42, 0.0
    %45 = vadd.xlane.f32.xlu0 %v44
    %v46 = vpop.xlane.xlu0 %45
    %v47 = vrot.slane %v46, 4
    %v48 = vadd.f32 %v46, %v47
    %v49 = vrot.slane %v48, 2
    %v50 = vadd.f32 %v48, %v49
    %v51 = vrot.slane %v50, 1
    %v52 = vadd.f32 %v50, %v51
    %s53 = vtos %v52
    %v54 = vld [vmem:[%s4] sm:$0xff]
    %v55 = vld [vmem:[%s2] sm:$0xff]
    %v56 = vsub.f32 %v54, %v55
    %v57 = vand.u32 2147483647, %v56
    %vm58 = vcmp.lt.f32.partialorder %v57, 1.0
    %v59 = vmul.f32 %v56, 0.5
    %v60 = vmul.f32 %v59, %v56
    %v61 = vsub.f32 %v57, 0.5
    %v62 = vsel %vm58, %v60, %v61
    %vm63 = vcmask 31744
    %v64 = vsel %vm63, %v62, 0.0
    %65 = vadd.xlane.f32.xlu0 %v64
    %v66 = vpop.xlane.xlu0 %65
    %v67 = vrot.slane %v66, 4
    %v68 = vadd.f32 %v66, %v67
    %v69 = vrot.slane %v68, 2
    %v70 = vadd.f32 %v68, %v69
    %v71 = vrot.slane %v70, 1
    %v72 = vadd.f32 %v70, %v71
    %s73 = vtos %v72
    %s74 = sld [smem:[#allocation2]]
    %s75 = smul.f32 %s74, %s53
    %s76 = sld [smem:[#allocation2 + $0x1]]
    %s77 = smul.f32 %s76, %s73
    %s78 = sadd.f32 %s75, %s77
    %s79 = scalar_lea.smem [#allocation5], 0
    %80 = sst [smem:[%s79]] %s78
    // Predicated region
    $region26: #{tpu_custom_call.1} parent=1 // pred_check
      _
    $region27: #{tpu_custom_call.1} parent=1 // pred_check_branch
      %82 = sbr.rel (0) target = $region29
    $region28: #{tpu_custom_call.1} parent=1 // pred_region
      %s84 = ssub.s32 16, 16
      %85 = vsyncadd [#allocation3], %s84
      %88 = dma.smem_to_hbm [#allocation5], 16, %s5, [#allocation3]
    $region29: #{tpu_custom_call.1} parent=1 // pred_fallthru
      _
    // Predicated region
    $region30: #{tpu_custom_call.1} parent=1 // pred_check
      _
    $region31: #{tpu_custom_call.1} parent=1 // pred_check_branch
      %90 = sbr.rel (0) target = $region33
    $region32: #{tpu_custom_call.1} parent=1 // pred_region
      %91 = dma.done [#allocation3], 16
    $region33: #{tpu_custom_call.1} parent=1 // pred_fallthru
      _
    %92 = sfence
    %93 = vsyncpa [#allocation3], 1
    %94 = vsyncpa [#allocation4], 1

</llo_original>
